<compile_context>
chip_gen: v5e
topology: v5e:2x2
jax: 0.10.0
libtpu: 0.0.40
codegen_flags: <defaults>
</compile_context>

<pallas_src>
import functools

import jax
import jax.numpy as jnp
from jax.experimental import pallas as pl
from jax.experimental.pallas import tpu as pltpu


# --------------------------------------------------------------------------
# Fused Pallas kernel: whole TCN stack + 1x1 head, full batch, one invocation
# --------------------------------------------------------------------------
def _mfn_fused_kernel(x_ref, w_ref, b_ref, o_ref, *, K, block_plan, head_plan):
    """x_ref: (N, Cin, L) NCL input (read directly, no wrapper transpose).
       w_ref: (n_mats, maxCout, maxKin) packed weights; slab j holds matmul j's
              (Cout_j, Kin_j) weight (tap k of a conv in columns [k*Cin,(k+1)*Cin)).
       b_ref: (maxCout, n_mats) biases as columns (broadcast over lanes).
       o_ref: (N, Cout_head, L) NCL output.
       block_plan: tuple of (cin, cout, dilation, has_down) per TemporalBlock.
       head_plan:  (c_last, c_head) for the 1x1 output conv.
    """
    N, _, L = x_ref.shape
    NL = N * L

    # Fold the batch onto the lane (time) axis: (Cin, N*L).  Stays in VMEM/vregs.
    x = jnp.concatenate([x_ref[n].astype(jnp.float32) for n in range(N)], axis=-1)

    # Local time index within each batch element, per lane (computed once).
    t_loc = jax.lax.broadcasted_iota(jnp.int32, (1, NL), 1) % L

    mask_cache = {}          # static Python cache: one compare per distinct offset

    def shift_right(h, off):
        """h[:, t] -> h[:, t-off], zero for the first `off` lanes of each element.

        XLU lane rotate + iota mask; the mask also kills any wrap-around across
        the folded batch boundary, so no per-element zero padding is needed.
        """
        if off == 0:
            return h
        if off not in mask_cache:
            mask_cache[off] = t_loc >= off
        return jnp.where(mask_cache[off], pltpu.roll(h, off, 1), 0.0)

    mat = [0]                # static counter over packed matmul slabs

    def dense(h, cout, kin):
        """One MXU dot + bias: (cout, kin) @ (kin, NL) -> (cout, NL), f32 acc."""
        j = mat[0]
        mat[0] += 1
        w = w_ref[j][0:cout, 0:kin]                 # static slice of resident slab
        b = b_ref[0:cout, j:j + 1]                  # (cout, 1) -> broadcast on lanes
        return jnp.dot(w, h, preferred_element_type=jnp.float32) + b

    def causal_conv_relu(h, cin, cout, dilation):
        """Dilated causal Conv1d (+Chomp) + bias + ReLU, all K taps in ONE dot."""
        taps = []
        for k in range(K):                          # static unroll (K is tiny)
            off = (K - 1 - k) * dilation
            taps.append(shift_right(h, off))
        hs = jnp.concatenate(taps, axis=0)          # (K*cin, NL) on sublanes
        return jnp.maximum(dense(hs, cout, K * cin), 0.0)

    # ---- TemporalConvNet blocks: everything stays on-chip ----
    h = x
    for (cin, cout, dilation, has_down) in block_plan:
        o = causal_conv_relu(h, cin, cout, dilation)
        o = causal_conv_relu(o, cout, cout, dilation)
        if has_down:
            res = dense(h, cout, cin)               # 1x1 downsample (+ bias)
        else:
            res = h
        h = jnp.maximum(o + res, 0.0)               # residual + ReLU

    # ---- 1x1 output head fused as epilogue ----
    c_last, c_head = head_plan
    y = dense(h, c_head, c_last)                    # (c_head, N*L)

    # Unfold the batch and store NCL directly.
    for n in range(N):
        o_ref[n] = y[:, n * L:(n + 1) * L].astype(o_ref.dtype)


# --------------------------------------------------------------------------
# Wrapper: pack params into 2 resident operands, single pallas_call, no grid
# --------------------------------------------------------------------------
def magnet_fusion_forward(x_ncl, params):
    """x_ncl: (N, C_in, L) -> (N, C_out, L), matching the PyTorch module."""
    N, Cin, L = x_ncl.shape
    blocks = params["blocks"]
    K = blocks[0]["w1"].shape[0]

    # Pack every conv / downsample / head weight into one (Cout, Kin) slab:
    # conv taps go to columns [k*Cin, (k+1)*Cin).  (In production this packing
    # would be done once at load time, not per forward call.)
    mats = []                      # list of (W2d, bias)
    block_plan = []
    cin = Cin
    for i, blk in enumerate(blocks):
        d = 2 ** i
        cout = blk["w1"].shape[2]
        w1 = jnp.transpose(blk["w1"], (2, 0, 1)).reshape(cout, K * cin)
        mats.append((w1, blk["b1"]))
        w2 = jnp.transpose(blk["w2"], (2, 0, 1)).reshape(cout, K * cout)
        mats.append((w2, blk["b2"]))
        has_down = "wd" in blk
        if has_down:
            mats.append((blk["wd"].T, blk["bd"]))   # (cout, cin)
        block_plan.append((cin, cout, d, has_down))
        cin = cout

    w_out = params["w_out"][0]                      # (C_last, C_head)
    c_head = w_out.shape[1]
    mats.append((w_out.T, params["b_out"]))         # (C_head, C_last)
    head_plan = (cin, c_head)

    n_mats = len(mats)
    max_co = max(w.shape[0] for w, _ in mats)
    max_ki = max(w.shape[1] for w, _ in mats)
    w_all = jnp.zeros((n_mats, max_co, max_ki), jnp.float32)
    b_all = jnp.zeros((max_co, n_mats), jnp.float32)
    for j, (w, b) in enumerate(mats):
        w_all = w_all.at[j, :w.shape[0], :w.shape[1]].set(w.astype(jnp.float32))
        b_all = b_all.at[:b.shape[0], j].set(b.astype(jnp.float32))

    kernel = functools.partial(_mfn_fused_kernel, K=K,
                               block_plan=tuple(block_plan),
                               head_plan=head_plan)

    def _full(a):
        nd = a.ndim
        return pl.BlockSpec(a.shape, lambda *_: (0,) * nd)   # whole array, resident

    # Single invocation (no grid): at N=2 the grid-step overhead outweighs any
    # megacore benefit; re-add a parallel leading axis once per-core work grows.
    return pl.pallas_call(
        kernel,
        out_shape=jax.ShapeDtypeStruct((N, c_head, L), x_ncl.dtype),
        in_specs=[_full(x_ncl), _full(w_all), _full(b_all)],
        out_specs=pl.BlockSpec((N, c_head, L), lambda *_: (0, 0, 0)),
    )(x_ncl, w_all, b_all)


# --------------------------------------------------------------------------
# Parameter init (weight_norm at init is identity; dropout is identity in eval)
# --------------------------------------------------------------------------
def init_params(key, input_channel, output_channel, kernel_size, layer_channels):
    params = {"blocks": []}
    keys = jax.random.split(key, 6 * len(layer_channels) + 2)
    idx = 0

    def nxt():
        nonlocal idx
        k = keys[idx]
        idx += 1
        return k

    ch_in = input_channel
    for ch_out in layer_channels:
        blk = {
            # TCN init: conv weights ~ N(0, 0.01); biases drawn the same way
            # to keep the synthetic model fully deterministic.
            "w1": 0.01 * jax.random.normal(nxt(), (kernel_size, ch_in, ch_out), jnp.float32),
            "b1": 0.01 * jax.random.normal(nxt(), (ch_out,), jnp.float32),
            "w2": 0.01 * jax.random.normal(nxt(), (kernel_size, ch_out, ch_out), jnp.float32),
            "b2": 0.01 * jax.random.normal(nxt(), (ch_out,), jnp.float32),
        }
        if ch_in != ch_out:
            blk["wd"] = 0.01 * jax.random.normal(nxt(), (ch_in, ch_out), jnp.float32)
            blk["bd"] = 0.01 * jax.random.normal(nxt(), (ch_out,), jnp.float32)
        else:
            idx += 2  # keep key consumption layout-independent
        params["blocks"].append(blk)
        ch_in = ch_out

    # output_layer: Conv1d(layer_channels[-1], output_channel, 1), N(0, 0.001)
    params["w_out"] = 0.001 * jax.random.normal(nxt(), (1, ch_in, output_channel), jnp.float32)
    params["b_out"] = 0.001 * jax.random.normal(nxt(), (output_channel,), jnp.float32)
    return params


# --------------------------------------------------------------------------
# Pure-JAX reference (lax.conv) for correctness checking
# --------------------------------------------------------------------------
def _ref_conv1d_causal(x_ncl, w_kio, b, dilation):
    """Conv1d(pad=(K-1)*d, dilation=d) + Chomp == left-pad-only conv."""
    w = jnp.transpose(w_kio, (2, 1, 0))              # (K,Cin,Cout) -> OIW
    K = w_kio.shape[0]
    pad = (K - 1) * dilation
    y = jax.lax.conv_general_dilated(
        x_ncl, w, window_strides=(1,), padding=[(pad, 0)],
        rhs_dilation=(dilation,), dimension_numbers=("NCW", "OIW", "NCW"))
    return y + b[None, :, None]


def ref_forward(x_ncl, params):
    h = x_ncl
    for i, blk in enumerate(params["blocks"]):
        d = 2 ** i
        res = h
        o = jax.nn.relu(_ref_conv1d_causal(h, blk["w1"], blk["b1"], d))
        o = jax.nn.relu(_ref_conv1d_causal(o, blk["w2"], blk["b2"], d))
        if "wd" in blk:
            res = _ref_conv1d_causal(h, blk["wd"][None, ...], blk["bd"], 1)
        h = jax.nn.relu(o + res)
    return _ref_conv1d_causal(h, params["w_out"], params["b_out"], 1)


# --------------------------------------------------------------------------
if __name__ == "__main__":
    # Small shapes consistent with the module:
    #   input_channel=4, output_channel=3, kernel_size=3, layer_channels=[8, 8]
    #   batch N=2, sequence length L=16
    input_channel, output_channel, kernel_size = 4, 3, 3
    layer_channels = [8, 8]
    N, L = 2, 16

    root = jax.random.PRNGKey(0)
    k_x, k_p = jax.random.split(root)
    x = jax.random.normal(k_x, (N, input_channel, L), jnp.float32)  # PyTorch NCL
    params = init_params(k_p, input_channel, output_channel, kernel_size,
                         layer_channels)

    y = jax.block_until_ready(magnet_fusion_forward(x, params))
    y_ref = jax.block_until_ready(ref_forward(x, params))

    assert y.shape == (N, output_channel, L), y.shape
    assert jnp.allclose(y, y_ref, atol=1e-5, rtol=1e-5), \
        f"max abs err {jnp.max(jnp.abs(y - y_ref))}"

    print("KERNEL_OK")
</pallas_src>

<mosaic_0001>
module attributes {stable_mosaic.version = 11 : i64} {
  func.func @_mfn_fused_kernel(%arg0: memref<2x4x16xf32, #tpu.memory_space<vmem>>, %arg1: memref<6x8x24xf32, #tpu.memory_space<vmem>>, %arg2: memref<8x6xf32, #tpu.memory_space<vmem>>, %arg3: memref<2x3x16xf32, #tpu.memory_space<vmem>>) attributes {dimension_semantics = [], scalar_prefetch = 0 : i64, scratch_operands = 0 : i64, tpu.core_type = #tpu.core_type<tc>} {
    %c0 = arith.constant 0 : index
    %c0_0 = arith.constant 0 : index
    %c0_1 = arith.constant 0 : index
    %0 = vector.load %arg0[%c0, %c0_0, %c0_1] : memref<2x4x16xf32, #tpu.memory_space<vmem>>, vector<1x4x16xf32>
    %1 = vector.shape_cast %0 : vector<1x4x16xf32> to vector<4x16xf32>
    %c1 = arith.constant 1 : index
    %c0_2 = arith.constant 0 : index
    %c0_3 = arith.constant 0 : index
    %2 = vector.load %arg0[%c1, %c0_2, %c0_3] : memref<2x4x16xf32, #tpu.memory_space<vmem>>, vector<1x4x16xf32>
    %3 = vector.shape_cast %2 : vector<1x4x16xf32> to vector<4x16xf32>
    %4 = tpu.concatenate %1, %3 in 1 : vector<4x16xf32>, vector<4x16xf32> -> vector<4x32xf32>
    %5 = tpu.iota {dimensions = array<i32: 1>} : vector<1x32xi32>
    %c16_i32 = arith.constant 16 : i32
    %c0_i32 = arith.constant 0 : i32
    %6 = arith.cmpi eq, %c16_i32, %c0_i32 : i32
    %c1_i32 = arith.constant 1 : i32
    %7 = arith.select %6, %c1_i32, %c16_i32 : i32
    %8 = vector.broadcast %7 : i32 to vector<1x32xi32>
    %9 = arith.remsi %5, %8 : vector<1x32xi32>
    %c0_i32_4 = arith.constant 0 : i32
    %10 = vector.broadcast %c0_i32_4 : i32 to vector<1x32xi32>
    %11 = arith.cmpi ne, %9, %10 : vector<1x32xi32>
    %c0_i32_5 = arith.constant 0 : i32
    %12 = vector.broadcast %c0_i32_5 : i32 to vector<1x32xi32>
    %13 = arith.cmpi slt, %9, %12 : vector<1x32xi32>
    %c0_i32_6 = arith.constant 0 : i32
    %14 = arith.cmpi slt, %7, %c0_i32_6 : i32
    %15 = vector.broadcast %14 : i1 to vector<1x32xi1>
    %16 = vector.broadcast %15 : vector<1x32xi1> to vector<1x32xi1>
    %17 = arith.xori %13, %16 : vector<1x32xi1>
    %18 = arith.andi %17, %11 : vector<1x32xi1>
    %19 = vector.broadcast %7 : i32 to vector<1x32xi32>
    %20 = arith.addi %9, %19 : vector<1x32xi32>
    %21 = arith.select %18, %20, %9 : vector<1x32xi1>, vector<1x32xi32>
    %c2_i32 = arith.constant 2 : i32
    %22 = vector.broadcast %c2_i32 : i32 to vector<1x32xi32>
    %23 = arith.cmpi sge, %21, %22 : vector<1x32xi32>
    %c2_i32_7 = arith.constant 2 : i32
    %24 = tpu.dynamic_rotate %4 by %c2_i32_7 dim 1 : vector<4x32xf32>, i32 -> vector<4x32xf32>
    %cst = arith.constant 0.000000e+00 : f32
    %25 = vector.shape_cast %23 : vector<1x32xi1> to vector<1x32xi1>
    %26 = vector.broadcast %25 : vector<1x32xi1> to vector<4x32xi1>
    %27 = vector.broadcast %cst : f32 to vector<4x32xf32>
    %28 = arith.select %26, %24, %27 : vector<4x32xi1>, vector<4x32xf32>
    %c1_i32_8 = arith.constant 1 : i32
    %29 = vector.broadcast %c1_i32_8 : i32 to vector<1x32xi32>
    %30 = arith.cmpi sge, %21, %29 : vector<1x32xi32>
    %c1_i32_9 = arith.constant 1 : i32
    %31 = tpu.dynamic_rotate %4 by %c1_i32_9 dim 1 : vector<4x32xf32>, i32 -> vector<4x32xf32>
    %cst_10 = arith.constant 0.000000e+00 : f32
    %32 = vector.shape_cast %30 : vector<1x32xi1> to vector<1x32xi1>
    %33 = vector.broadcast %32 : vector<1x32xi1> to vector<4x32xi1>
    %34 = vector.broadcast %cst_10 : f32 to vector<4x32xf32>
    %35 = arith.select %33, %31, %34 : vector<4x32xi1>, vector<4x32xf32>
    %36 = tpu.concatenate %28, %35, %4 in 0 : vector<4x32xf32>, vector<4x32xf32>, vector<4x32xf32> -> vector<12x32xf32>
    %c0_11 = arith.constant 0 : index
    %c0_12 = arith.constant 0 : index
    %c0_13 = arith.constant 0 : index
    %37 = vector.load %arg1[%c0_11, %c0_12, %c0_13] : memref<6x8x24xf32, #tpu.memory_space<vmem>>, vector<1x8x24xf32>
    %38 = vector.shape_cast %37 : vector<1x8x24xf32> to vector<8x24xf32>
    %39 = vector.extract_strided_slice %38 {offsets = [0, 0], sizes = [8, 12], strides = [1, 1]} : vector<8x24xf32> to vector<8x12xf32>
    %c0_14 = arith.constant 0 : index
    %c0_15 = arith.constant 0 : index
    %40 = vector.load %arg2[%c0_14, %c0_15] : memref<8x6xf32, #tpu.memory_space<vmem>>, vector<8x1xf32>
    %cst_16 = arith.constant dense<0.000000e+00> : vector<8x32xf32>
    %41 = tpu.matmul %39, %36, %cst_16 {dimension_numbers = #tpu.dot_dimension_numbers<[1], [0], [0], [1], [0, 0, 1, 1], [], []>} : vector<8x12xf32>, vector<12x32xf32>, vector<8x32xf32> -> vector<8x32xf32>
    %42 = vector.broadcast %40 : vector<8x1xf32> to vector<8x32xf32>
    %43 = arith.addf %41, %42 : vector<8x32xf32>
    %cst_17 = arith.constant 0.000000e+00 : f32
    %44 = vector.broadcast %cst_17 : f32 to vector<8x32xf32>
    %45 = arith.maximumf %43, %44 : vector<8x32xf32>
    %c2_i32_18 = arith.constant 2 : i32
    %46 = tpu.dynamic_rotate %45 by %c2_i32_18 dim 1 : vector<8x32xf32>, i32 -> vector<8x32xf32>
    %cst_19 = arith.constant 0.000000e+00 : f32
    %47 = vector.shape_cast %23 : vector<1x32xi1> to vector<1x32xi1>
    %48 = vector.broadcast %47 : vector<1x32xi1> to vector<8x32xi1>
    %49 = vector.broadcast %cst_19 : f32 to vector<8x32xf32>
    %50 = arith.select %48, %46, %49 : vector<8x32xi1>, vector<8x32xf32>
    %c1_i32_20 = arith.constant 1 : i32
    %51 = tpu.dynamic_rotate %45 by %c1_i32_20 dim 1 : vector<8x32xf32>, i32 -> vector<8x32xf32>
    %cst_21 = arith.constant 0.000000e+00 : f32
    %52 = vector.shape_cast %30 : vector<1x32xi1> to vector<1x32xi1>
    %53 = vector.broadcast %52 : vector<1x32xi1> to vector<8x32xi1>
    %54 = vector.broadcast %cst_21 : f32 to vector<8x32xf32>
    %55 = arith.select %53, %51, %54 : vector<8x32xi1>, vector<8x32xf32>
    %56 = tpu.concatenate %50, %55, %45 in 0 : vector<8x32xf32>, vector<8x32xf32>, vector<8x32xf32> -> vector<24x32xf32>
    %c1_22 = arith.constant 1 : index
    %c0_23 = arith.constant 0 : index
    %c0_24 = arith.constant 0 : index
    %57 = vector.load %arg1[%c1_22, %c0_23, %c0_24] : memref<6x8x24xf32, #tpu.memory_space<vmem>>, vector<1x8x24xf32>
    %58 = vector.shape_cast %57 : vector<1x8x24xf32> to vector<8x24xf32>
    %c0_25 = arith.constant 0 : index
    %c1_26 = arith.constant 1 : index
    %59 = vector.load %arg2[%c0_25, %c1_26] : memref<8x6xf32, #tpu.memory_space<vmem>>, vector<8x1xf32>
    %cst_27 = arith.constant dense<0.000000e+00> : vector<8x32xf32>
    %60 = tpu.matmul %58, %56, %cst_27 {dimension_numbers = #tpu.dot_dimension_numbers<[1], [0], [0], [1], [0, 0, 1, 1], [], []>} : vector<8x24xf32>, vector<24x32xf32>, vector<8x32xf32> -> vector<8x32xf32>
    %61 = vector.broadcast %59 : vector<8x1xf32> to vector<8x32xf32>
    %62 = arith.addf %60, %61 : vector<8x32xf32>
    %cst_28 = arith.constant 0.000000e+00 : f32
    %63 = vector.broadcast %cst_28 : f32 to vector<8x32xf32>
    %64 = arith.maximumf %62, %63 : vector<8x32xf32>
    %c2 = arith.constant 2 : index
    %c0_29 = arith.constant 0 : index
    %c0_30 = arith.constant 0 : index
    %65 = vector.load %arg1[%c2, %c0_29, %c0_30] : memref<6x8x24xf32, #tpu.memory_space<vmem>>, vector<1x8x24xf32>
    %66 = vector.shape_cast %65 : vector<1x8x24xf32> to vector<8x24xf32>
    %67 = vector.extract_strided_slice %66 {offsets = [0, 0], sizes = [8, 4], strides = [1, 1]} : vector<8x24xf32> to vector<8x4xf32>
    %c0_31 = arith.constant 0 : index
    %c2_32 = arith.constant 2 : index
    %68 = vector.load %arg2[%c0_31, %c2_32] : memref<8x6xf32, #tpu.memory_space<vmem>>, vector<8x1xf32>
    %cst_33 = arith.constant dense<0.000000e+00> : vector<8x32xf32>
    %69 = tpu.matmul %67, %4, %cst_33 {dimension_numbers = #tpu.dot_dimension_numbers<[1], [0], [0], [1], [0, 0, 1, 1], [], []>} : vector<8x4xf32>, vector<4x32xf32>, vector<8x32xf32> -> vector<8x32xf32>
    %70 = vector.broadcast %68 : vector<8x1xf32> to vector<8x32xf32>
    %71 = arith.addf %69, %70 : vector<8x32xf32>
    %72 = arith.addf %64, %71 : vector<8x32xf32>
    %cst_34 = arith.constant 0.000000e+00 : f32
    %73 = vector.broadcast %cst_34 : f32 to vector<8x32xf32>
    %74 = arith.maximumf %72, %73 : vector<8x32xf32>
    %c4_i32 = arith.constant 4 : i32
    %75 = vector.broadcast %c4_i32 : i32 to vector<1x32xi32>
    %76 = arith.cmpi sge, %21, %75 : vector<1x32xi32>
    %c4_i32_35 = arith.constant 4 : i32
    %77 = tpu.dynamic_rotate %74 by %c4_i32_35 dim 1 : vector<8x32xf32>, i32 -> vector<8x32xf32>
    %cst_36 = arith.constant 0.000000e+00 : f32
    %78 = vector.shape_cast %76 : vector<1x32xi1> to vector<1x32xi1>
    %79 = vector.broadcast %78 : vector<1x32xi1> to vector<8x32xi1>
    %80 = vector.broadcast %cst_36 : f32 to vector<8x32xf32>
    %81 = arith.select %79, %77, %80 : vector<8x32xi1>, vector<8x32xf32>
    %c2_i32_37 = arith.constant 2 : i32
    %82 = tpu.dynamic_rotate %74 by %c2_i32_37 dim 1 : vector<8x32xf32>, i32 -> vector<8x32xf32>
    %cst_38 = arith.constant 0.000000e+00 : f32
    %83 = vector.shape_cast %23 : vector<1x32xi1> to vector<1x32xi1>
    %84 = vector.broadcast %83 : vector<1x32xi1> to vector<8x32xi1>
    %85 = vector.broadcast %cst_38 : f32 to vector<8x32xf32>
    %86 = arith.select %84, %82, %85 : vector<8x32xi1>, vector<8x32xf32>
    %87 = tpu.concatenate %81, %86, %74 in 0 : vector<8x32xf32>, vector<8x32xf32>, vector<8x32xf32> -> vector<24x32xf32>
    %c3 = arith.constant 3 : index
    %c0_39 = arith.constant 0 : index
    %c0_40 = arith.constant 0 : index
    %88 = vector.load %arg1[%c3, %c0_39, %c0_40] : memref<6x8x24xf32, #tpu.memory_space<vmem>>, vector<1x8x24xf32>
    %89 = vector.shape_cast %88 : vector<1x8x24xf32> to vector<8x24xf32>
    %c0_41 = arith.constant 0 : index
    %c3_42 = arith.constant 3 : index
    %90 = vector.load %arg2[%c0_41, %c3_42] : memref<8x6xf32, #tpu.memory_space<vmem>>, vector<8x1xf32>
    %cst_43 = arith.constant dense<0.000000e+00> : vector<8x32xf32>
    %91 = tpu.matmul %89, %87, %cst_43 {dimension_numbers = #tpu.dot_dimension_numbers<[1], [0], [0], [1], [0, 0, 1, 1], [], []>} : vector<8x24xf32>, vector<24x32xf32>, vector<8x32xf32> -> vector<8x32xf32>
    %92 = vector.broadcast %90 : vector<8x1xf32> to vector<8x32xf32>
    %93 = arith.addf %91, %92 : vector<8x32xf32>
    %cst_44 = arith.constant 0.000000e+00 : f32
    %94 = vector.broadcast %cst_44 : f32 to vector<8x32xf32>
    %95 = arith.maximumf %93, %94 : vector<8x32xf32>
    %c4_i32_45 = arith.constant 4 : i32
    %96 = tpu.dynamic_rotate %95 by %c4_i32_45 dim 1 : vector<8x32xf32>, i32 -> vector<8x32xf32>
    %cst_46 = arith.constant 0.000000e+00 : f32
    %97 = vector.shape_cast %76 : vector<1x32xi1> to vector<1x32xi1>
    %98 = vector.broadcast %97 : vector<1x32xi1> to vector<8x32xi1>
    %99 = vector.broadcast %cst_46 : f32 to vector<8x32xf32>
    %100 = arith.select %98, %96, %99 : vector<8x32xi1>, vector<8x32xf32>
    %c2_i32_47 = arith.constant 2 : i32
    %101 = tpu.dynamic_rotate %95 by %c2_i32_47 dim 1 : vector<8x32xf32>, i32 -> vector<8x32xf32>
    %cst_48 = arith.constant 0.000000e+00 : f32
    %102 = vector.shape_cast %23 : vector<1x32xi1> to vector<1x32xi1>
    %103 = vector.broadcast %102 : vector<1x32xi1> to vector<8x32xi1>
    %104 = vector.broadcast %cst_48 : f32 to vector<8x32xf32>
    %105 = arith.select %103, %101, %104 : vector<8x32xi1>, vector<8x32xf32>
    %106 = tpu.concatenate %100, %105, %95 in 0 : vector<8x32xf32>, vector<8x32xf32>, vector<8x32xf32> -> vector<24x32xf32>
    %c4 = arith.constant 4 : index
    %c0_49 = arith.constant 0 : index
    %c0_50 = arith.constant 0 : index
    %107 = vector.load %arg1[%c4, %c0_49, %c0_50] : memref<6x8x24xf32, #tpu.memory_space<vmem>>, vector<1x8x24xf32>
    %108 = vector.shape_cast %107 : vector<1x8x24xf32> to vector<8x24xf32>
    %c0_51 = arith.constant 0 : index
    %c4_52 = arith.constant 4 : index
    %109 = vector.load %arg2[%c0_51, %c4_52] : memref<8x6xf32, #tpu.memory_space<vmem>>, vector<8x1xf32>
    %cst_53 = arith.constant dense<0.000000e+00> : vector<8x32xf32>
    %110 = tpu.matmul %108, %106, %cst_53 {dimension_numbers = #tpu.dot_dimension_numbers<[1], [0], [0], [1], [0, 0, 1, 1], [], []>} : vector<8x24xf32>, vector<24x32xf32>, vector<8x32xf32> -> vector<8x32xf32>
    %111 = vector.broadcast %109 : vector<8x1xf32> to vector<8x32xf32>
    %112 = arith.addf %110, %111 : vector<8x32xf32>
    %cst_54 = arith.constant 0.000000e+00 : f32
    %113 = vector.broadcast %cst_54 : f32 to vector<8x32xf32>
    %114 = arith.maximumf %112, %113 : vector<8x32xf32>
    %115 = arith.addf %114, %74 : vector<8x32xf32>
    %cst_55 = arith.constant 0.000000e+00 : f32
    %116 = vector.broadcast %cst_55 : f32 to vector<8x32xf32>
    %117 = arith.maximumf %115, %116 : vector<8x32xf32>
    %c5 = arith.constant 5 : index
    %c0_56 = arith.constant 0 : index
    %c0_57 = arith.constant 0 : index
    %118 = vector.load %arg1[%c5, %c0_56, %c0_57] : memref<6x8x24xf32, #tpu.memory_space<vmem>>, vector<1x8x24xf32>
    %119 = vector.shape_cast %118 : vector<1x8x24xf32> to vector<8x24xf32>
    %120 = vector.extract_strided_slice %119 {offsets = [0, 0], sizes = [3, 8], strides = [1, 1]} : vector<8x24xf32> to vector<3x8xf32>
    %c0_58 = arith.constant 0 : index
    %c5_59 = arith.constant 5 : index
    %121 = vector.load %arg2[%c0_58, %c5_59] : memref<8x6xf32, #tpu.memory_space<vmem>>, vector<3x1xf32>
    %cst_60 = arith.constant dense<0.000000e+00> : vector<3x32xf32>
    %122 = tpu.matmul %120, %117, %cst_60 {dimension_numbers = #tpu.dot_dimension_numbers<[1], [0], [0], [1], [0, 0, 1, 1], [], []>} : vector<3x8xf32>, vector<8x32xf32>, vector<3x32xf32> -> vector<3x32xf32>
    %123 = vector.broadcast %121 : vector<3x1xf32> to vector<3x32xf32>
    %124 = arith.addf %122, %123 : vector<3x32xf32>
    %125 = vector.extract_strided_slice %124 {offsets = [0, 0], sizes = [3, 16], strides = [1, 1]} : vector<3x32xf32> to vector<3x16xf32>
    %c0_61 = arith.constant 0 : index
    %c0_62 = arith.constant 0 : index
    %c0_63 = arith.constant 0 : index
    %126 = vector.load %arg3[%c0_61, %c0_62, %c0_63] : memref<2x3x16xf32, #tpu.memory_space<vmem>>, vector<1x3x16xf32>
    %127 = vector.shape_cast %126 : vector<1x3x16xf32> to vector<3x16xf32>
    %128 = vector.shape_cast %125 : vector<3x16xf32> to vector<1x3x16xf32>
    tpu.vector_store %arg3[%c0_61, %c0_62, %c0_63], %128 {strides = array<i32>} : memref<2x3x16xf32, #tpu.memory_space<vmem>>, vector<1x3x16xf32>,
    %129 = vector.extract_strided_slice %124 {offsets = [0, 16], sizes = [3, 16], strides = [1, 1]} : vector<3x32xf32> to vector<3x16xf32>
    %c1_64 = arith.constant 1 : index
    %c0_65 = arith.constant 0 : index
    %c0_66 = arith.constant 0 : index
    %130 = vector.load %arg3[%c1_64, %c0_65, %c0_66] : memref<2x3x16xf32, #tpu.memory_space<vmem>>, vector<1x3x16xf32>
    %131 = vector.shape_cast %130 : vector<1x3x16xf32> to vector<3x16xf32>
    %132 = vector.shape_cast %129 : vector<3x16xf32> to vector<1x3x16xf32>
    tpu.vector_store %arg3[%c1_64, %c0_65, %c0_66], %132 {strides = array<i32>} : memref<2x3x16xf32, #tpu.memory_space<vmem>>, vector<1x3x16xf32>,
    return
  }
}

</mosaic_0001>

<llo_original>
// kernel: tpu_custom_call.1
$region0: #{tpu_custom_call.1}
  #allocation0 [shape = 'u32[]', space=smem, size = 0x4, offset = 0x4, fixed_abs, tag = 'smem constant byte address 0x4 - core index']
  #allocation1 [shape = 'u32[72,128]{1,0:T(1,128)}', space=vmem, size = 0x9000, scoped, tag = 'internal scratch']
  %s0 = inlined_call_operand.hbm [shape: f32[2,4,16], index: 0, kind: input, shape index: {}]
  %s1 = inlined_call_operand.hbm [shape: f32[6,8,24], index: 1, kind: input, shape index: {}]
  %s2 = inlined_call_operand.hbm [shape: f32[8,6], index: 2, kind: input, shape index: {}]
  %s3 = inlined_call_operand.vmem [shape: f32[2,3,16], index: 3, kind: output, shape index: {}]
  %s4 = sld [smem:[#allocation0]]
  $region34: #{tpu_custom_call.1} parent=0
    _
  %s6 = ssub.s32 1, %s4
  %s7 = scalar_select 0, %s6, %s4
  $region1: #{tpu_custom_call.1} parent=0
    #allocation2 [shape = 'u8[4096]{0}', space=vmem, size = 0x1000, scoped, tag = 'input window, operand 0, single buffered']
    #allocation3 [shape = 's32[1]{0}', space=sflag, size = 0x4, scoped, tag = 'scoped memory for tpu_custom_call.1']
    #allocation4 [shape = 'u8[24576]{0}', space=vmem, size = 0x6000, scoped, tag = 'input window, operand 1, single buffered']
    #allocation5 [shape = 's32[1]{0}', space=sflag, size = 0x4, scoped, tag = 'scoped memory for tpu_custom_call.1']
    #allocation6 [shape = 'u8[4096]{0}', space=vmem, size = 0x1000, scoped, tag = 'input window, operand 2, single buffered']
    %8 = vsyncpa [#allocation3], 0
    %9 = vsyncpa [#allocation5], 0
    // Predicated region
    $region2: #{tpu_custom_call.1} parent=1 // pred_check
      _
    $region3: #{tpu_custom_call.1} parent=1 // pred_check_branch
      %11 = sbr.rel (0) target = $region5
    $region4: #{tpu_custom_call.1} parent=1 // pred_region
      %13 = vsyncadd [#allocation3], 0
      %s14 = sshll.u32 %s0, 4
      %s15 = int_to_ptr.hbm [resolvable:$true] %s14
      %s16 = sshll.u32 [#allocation2], 4
      %s17 = int_to_ptr.vmem [resolvable:$true] %s16
      %22 = dma.hbm_to_vmem [thread:$0]  %s15, 128, %s17, [#allocation3], 64, 64, 4
    $region5: #{tpu_custom_call.1} parent=1 // pred_fallthru
      _
    // Predicated region
    $region6: #{tpu_custom_call.1} parent=1 // pred_check
      _
    $region7: #{tpu_custom_call.1} parent=1 // pred_check_branch
      %24 = sbr.rel (0) target = $region9
    $region8: #{tpu_custom_call.1} parent=1 // pred_region
      %26 = vsyncadd [#allocation5], 0
      %s27 = sshll.u32 %s1, 4
      %s28 = int_to_ptr.hbm [resolvable:$true] %s27
      %s29 = sshll.u32 [#allocation4], 4
      %s30 = int_to_ptr.vmem [resolvable:$true] %s29
      %35 = dma.hbm_to_vmem [thread:$0]  %s28, 768, %s30, [#allocation5], 128, 128, 8
    $region9: #{tpu_custom_call.1} parent=1 // pred_fallthru
      _
    // Predicated region
    $region10: #{tpu_custom_call.1} parent=1 // pred_check
      _
    $region11: #{tpu_custom_call.1} parent=1 // pred_check_branch
      %37 = sbr.rel (0) target = $region13
    $region12: #{tpu_custom_call.1} parent=1 // pred_region
      %39 = vsyncadd [#allocation5], 0
      %s41 = sshll.u32 %s2, 4
      %s42 = int_to_ptr.hbm [resolvable:$true] %s41
      %s43 = sshll.u32 [#allocation6], 4
      %s44 = int_to_ptr.vmem [resolvable:$true] %s43
      %46 = dma.hbm_to_vmem [thread:$0]  %s42, 128, %s44, [#allocation5]
    $region13: #{tpu_custom_call.1} parent=1 // pred_fallthru
      _
    // Predicated region
    $region14: #{tpu_custom_call.1} parent=1 // pred_check
      _
    $region15: #{tpu_custom_call.1} parent=1 // pred_check_branch
      %48 = sbr.rel (0) target = $region17
    $region16: #{tpu_custom_call.1} parent=1 // pred_region
      %50 = dma.done [#allocation3], 128
    $region17: #{tpu_custom_call.1} parent=1 // pred_fallthru
      _
    // Predicated region
    $region18: #{tpu_custom_call.1} parent=1 // pred_check
      _
    $region19: #{tpu_custom_call.1} parent=1 // pred_check_branch
      %52 = sbr.rel (0) target = $region21
    $region20: #{tpu_custom_call.1} parent=1 // pred_region
      %54 = dma.done [#allocation5], 768
    $region21: #{tpu_custom_call.1} parent=1 // pred_fallthru
      _
    // Predicated region
    $region22: #{tpu_custom_call.1} parent=1 // pred_check
      _
    $region23: #{tpu_custom_call.1} parent=1 // pred_check_branch
      %56 = sbr.rel (0) target = $region25
    $region24: #{tpu_custom_call.1} parent=1 // pred_region
      %58 = dma.done [#allocation5], 128
    $region25: #{tpu_custom_call.1} parent=1 // pred_fallthru
      _
    %v59 = vld [vmem:[#allocation2] sm:$0xf]
    %s60 = scalar_lea.vmem [#allocation2], 4
    %v61 = vld [vmem:[%s60] sm:$0xf]
    %63 = vrot.lane.b32.xlu0 %v61, 16
    %v64 = vpop.permute.xlu0 %63
    %vm66 = vcmask 130048
    %v67 = vsel %vm66, %v59, %v64
    %v68 = vlaneseq
    %v69 = vand.u32 %v68, 127
    %vm70 = vcmp.lt.s32.totalorder %v69, 0
    %v71 = vsub.s32 0, %v69
    %v72 = vsel %vm70, %v71, %v69
    %v73 = vshrl.u32 %v72, 4
    %v74 = vand.u32 %v72, 15
    %v75 = vsub.s32 0, %v74
    %v76 = vsel %vm70, %v75, %v74
    %vm77 = vcmp.ne.s32.totalorder %v76, 0
    %vm78 = vcmp.lt.s32.totalorder %v76, 0
    %vm79 = vmand %vm78, %vm77
    %v80 = vadd.s32 %v76, 16
    %v81 = vsel %vm79, %v80, %v76
    %vm82 = vcmp.ge.s32.totalorder %v81, 2
    %vm83 = vcmask 1047808
    %84 = vrot.lane.b32.xlu0 %v67, 32
    %v85 = vpop.permute.xlu0 %84
    %v86 = vsel %vm83, %v85, %v67
    %87 = vrot.lane.b32.xlu0 %v86, 32
    %v88 = vpop.permute.xlu0 %87
    %v89 = vsel %vm83, %v88, %v67
    %v90 = vsel %vm82, 1, 0
    %vm91 = vcmp.eq.s32.totalorder %v90, 1
    %93 = vrot.lane.b32.xlu0 %v89, 98
    %v94 = vpop.permute.xlu0 %93
    %v96 = vsel %vm91, %v94, 0.0
    %vm97 = vcmp.ge.s32.totalorder %v81, 1
    %v98 = vsel %vm97, 1, 0
    %vm99 = vcmp.eq.s32.totalorder %v98, 1
    %100 = vrot.lane.b32.xlu0 %v89, 97
    %v101 = vpop.permute.xlu0 %100
    %v103 = vsel %vm99, %v101, 0.0
    %v105 = vrot.slane %v103, 4
    %vm107 = vcmask 1043456
    %v108 = vsel %vm107, %v96, %v105
    %v109 = vld [vmem:[#allocation4] sm:$0xff]
    %v110 = vld [vmem:[#allocation6] sm:$0xff]
    %112 = vset.pattern.permute.xlu0 0
    %113 = vperm.xlu0 %112, %v110
    %v114 = vpop.permute.xlu0 %113
    %vm116 = vcmask 97280
    %v118 = vsel %vm116, %v109, 0
    %v121 = vsel %vm107, %v67, 0
    %123 = vmatpush.msra.mxu0 0.0
    %124 = vmatpush.msra.mxu0 0.0
    %125 = vmatpush.msra.mxu0 0.0
    %126 = vmatpush.msra.mxu0 0.0
    %127 = vmatpush.msra.mxu0 0.0
    %128 = vmatpush.msra.mxu0 0.0
    %129 = vmatpush.msra.mxu0 0.0
    %130 = vmatpush.msra.mxu0 0.0
    %131 = vmatpush.msra.mxu0 0.0
    %132 = vmatpush.msra.mxu0 0.0
    %133 = vmatpush.msra.mxu0 0.0
    %134 = vmatpush.msra.mxu0 0.0
    %135 = vmatpush.msra.mxu0 0.0
    %136 = vmatpush.msra.mxu0 0.0
    %137 = vmatpush.msra.mxu0 %v121
    %138 = vmatpush.msra.mxu0 %v108
    %139 = vmatmul.f32.gmra.mxu0 %v118
    %v140 = vpop.f32.mrf.mxu0
    %v141 = vadd.f32 %v114, %v140
    %142 = vdwg.mxu0
    %v143 = vmax.f32 %v141, 0.0
    %144 = vrot.lane.b32.xlu0 %v143, 32
    %v145 = vpop.permute.xlu0 %144
    %v146 = vsel %vm83, %v145, %v143
    %147 = vrot.lane.b32.xlu0 %v146, 32
    %v148 = vpop.permute.xlu0 %147
    %v149 = vsel %vm83, %v148, %v143
    %151 = vrot.lane.b32.xlu0 %v149, 98
    %v152 = vpop.permute.xlu0 %151
    %v154 = vsel %vm91, %v152, 0.0
    %155 = vrot.lane.b32.xlu0 %v149, 97
    %v156 = vpop.permute.xlu0 %155
    %v158 = vsel %vm99, %v156, 0.0
    %s159 = scalar_lea.vmem [#allocation4], 8
    %v160 = vld [vmem:[%s159] sm:$0xff]
    %161 = vset.pattern.permute.xlu0 1
    %162 = vperm.xlu0 %161, %v110
    %v163 = vpop.permute.xlu0 %162
    %vm165 = vcmask 195584
    %v167 = vsel %vm165, %v160, 0
    %169 = vmatpush.msra.mxu0 0.0
    %170 = vmatpush.msra.mxu0 0.0
    %171 = vmatpush.msra.mxu0 0.0
    %172 = vmatpush.msra.mxu0 0.0
    %173 = vmatpush.msra.mxu0 0.0
    %174 = vmatpush.msra.mxu0 0.0
    %175 = vmatpush.msra.mxu0 0.0
    %176 = vmatpush.msra.mxu0 0.0
    %177 = vmatpush.msra.mxu0 0.0
    %178 = vmatpush.msra.mxu0 0.0
    %179 = vmatpush.msra.mxu0 0.0
    %180 = vmatpush.msra.mxu0 0.0
    %181 = vmatpush.msra.mxu0 0.0
    %182 = vmatpush.msra.mxu0 %v143
    %183 = vmatpush.msra.mxu0 %v158
    %184 = vmatpush.msra.mxu0 %v154
    %185 = vmatmul.f32.gmra.mxu0 %v167
    %v186 = vpop.f32.mrf.mxu0
    %v187 = vadd.f32 %v163, %v186
    %188 = vdwg.mxu0
    %v189 = vmax.f32 %v187, 0.0
    %s190 = scalar_lea.vmem [#allocation4], 16
    %v191 = vld [vmem:[%s190] sm:$0xff]
    %192 = vset.pattern.permute.xlu0 2
    %193 = vperm.xlu0 %192, %v110
    %v194 = vpop.permute.xlu0 %193
    %vm196 = vcmask 31744
    %v198 = vsel %vm196, %v191, 0
    %200 = vmatpush.msra.mxu0 0.0
    %201 = vmatpush.msra.mxu0 0.0
    %202 = vmatpush.msra.mxu0 0.0
    %203 = vmatpush.msra.mxu0 0.0
    %204 = vmatpush.msra.mxu0 0.0
    %205 = vmatpush.msra.mxu0 0.0
    %206 = vmatpush.msra.mxu0 0.0
    %207 = vmatpush.msra.mxu0 0.0
    %208 = vmatpush.msra.mxu0 0.0
    %209 = vmatpush.msra.mxu0 0.0
    %210 = vmatpush.msra.mxu0 0.0
    %211 = vmatpush.msra.mxu0 0.0
    %212 = vmatpush.msra.mxu0 0.0
    %213 = vmatpush.msra.mxu0 0.0
    %214 = vmatpush.msra.mxu0 0.0
    %215 = vmatpush.msra.mxu0 %v121
    %216 = vmatmul.f32.gmra.mxu0 %v198
    %v217 = vpop.f32.mrf.mxu0
    %v218 = vadd.f32 %v194, %v217
    %219 = vdwg.mxu0
    %v220 = vadd.f32 %v189, %v218
    %v221 = vmax.f32 %v220, 0.0
    %vm222 = vcmp.ge.s32.totalorder %v81, 4
    %223 = vrot.lane.b32.xlu0 %v221, 32
    %v224 = vpop.permute.xlu0 %223
    %v225 = vsel %vm83, %v224, %v221
    %226 = vrot.lane.b32.xlu0 %v225, 32
    %v227 = vpop.permute.xlu0 %226
    %v228 = vsel %vm83, %v227, %v221
    %v229 = vsel %vm222, 1, 0
    %vm230 = vcmp.eq.s32.totalorder %v229, 1
    %232 = vrot.lane.b32.xlu0 %v228, 100
    %v233 = vpop.permute.xlu0 %232
    %v235 = vsel %vm230, %v233, 0.0
    %236 = vrot.lane.b32.xlu0 %v228, 98
    %v237 = vpop.permute.xlu0 %236
    %v239 = vsel %vm91, %v237, 0.0
    %s240 = scalar_lea.vmem [#allocation4], 24
    %v241 = vld [vmem:[%s240] sm:$0xff]
    %242 = vset.pattern.permute.xlu0 3
    %243 = vperm.xlu0 %242, %v110
    %v244 = vpop.permute.xlu0 %243
    %v247 = vsel %vm165, %v241, 0
    %249 = vmatpush.msra.mxu0 0.0
    %250 = vmatpush.msra.mxu0 0.0
    %251 = vmatpush.msra.mxu0 0.0
    %252 = vmatpush.msra.mxu0 0.0
    %253 = vmatpush.msra.mxu0 0.0
    %254 = vmatpush.msra.mxu0 0.0
    %255 = vmatpush.msra.mxu0 0.0
    %256 = vmatpush.msra.mxu0 0.0
    %257 = vmatpush.msra.mxu0 0.0
    %258 = vmatpush.msra.mxu0 0.0
    %259 = vmatpush.msra.mxu0 0.0
    %260 = vmatpush.msra.mxu0 0.0
    %261 = vmatpush.msra.mxu0 0.0
    %262 = vmatpush.msra.mxu0 %v221
    %263 = vmatpush.msra.mxu0 %v239
    %264 = vmatpush.msra.mxu0 %v235
    %265 = vmatmul.f32.gmra.mxu0 %v247
    %v266 = vpop.f32.mrf.mxu0
    %v267 = vadd.f32 %v244, %v266
    %268 = vdwg.mxu0
    %v269 = vmax.f32 %v267, 0.0
    %270 = vrot.lane.b32.xlu0 %v269, 32
    %v271 = vpop.permute.xlu0 %270
    %v272 = vsel %vm83, %v271, %v269
    %273 = vrot.lane.b32.xlu0 %v272, 32
    %v274 = vpop.permute.xlu0 %273
    %v275 = vsel %vm83, %v274, %v269
    %277 = vrot.lane.b32.xlu0 %v275, 100
    %v278 = vpop.permute.xlu0 %277
    %v280 = vsel %vm230, %v278, 0.0
    %281 = vrot.lane.b32.xlu0 %v275, 98
    %v282 = vpop.permute.xlu0 %281
    %v284 = vsel %vm91, %v282, 0.0
    %s285 = scalar_lea.vmem [#allocation4], 32
    %v286 = vld [vmem:[%s285] sm:$0xff]
    %287 = vset.pattern.permute.xlu0 4
    %288 = vperm.xlu0 %287, %v110
    %v289 = vpop.permute.xlu0 %288
    %v292 = vsel %vm165, %v286, 0
    %294 = vmatpush.msra.mxu0 0.0
    %295 = vmatpush.msra.mxu0 0.0
    %296 = vmatpush.msra.mxu0 0.0
    %297 = vmatpush.msra.mxu0 0.0
    %298 = vmatpush.msra.mxu0 0.0
    %299 = vmatpush.msra.mxu0 0.0
    %300 = vmatpush.msra.mxu0 0.0
    %301 = vmatpush.msra.mxu0 0.0
    %302 = vmatpush.msra.mxu0 0.0
    %303 = vmatpush.msra.mxu0 0.0
    %304 = vmatpush.msra.mxu0 0.0
    %305 = vmatpush.msra.mxu0 0.0
    %306 = vmatpush.msra.mxu0 0.0
    %307 = vmatpush.msra.mxu0 %v269
    %308 = vmatpush.msra.mxu0 %v284
    %309 = vmatpush.msra.mxu0 %v280
    %310 = vmatmul.f32.gmra.mxu0 %v292
    %v311 = vpop.f32.mrf.mxu0
    %v312 = vadd.f32 %v289, %v311
    %313 = vdwg.mxu0
    %v314 = vmax.f32 %v312, 0.0
    %v315 = vadd.f32 %v314, %v221
    %v316 = vmax.f32 %v315, 0.0
    %s317 = scalar_lea.vmem [#allocation4], 40
    %v318 = vld [vmem:[%s317] sm:$0xff]
    %v319 = vld [vmem:[#allocation6] sm:$0x7]
    %321 = vset.pattern.permute.xlu0 5
    %322 = vperm.xlu0 %321, %v319
    %v323 = vpop.permute.xlu0 %322
    %vm325 = vcmask 64512
    %v327 = vsel %vm325, %v318, 0
    %329 = vmatpush.msra.mxu0 0.0
    %330 = vmatpush.msra.mxu0 0.0
    %331 = vmatpush.msra.mxu0 0.0
    %332 = vmatpush.msra.mxu0 0.0
    %333 = vmatpush.msra.mxu0 0.0
    %334 = vmatpush.msra.mxu0 0.0
    %335 = vmatpush.msra.mxu0 0.0
    %336 = vmatpush.msra.mxu0 0.0
    %337 = vmatpush.msra.mxu0 0.0
    %338 = vmatpush.msra.mxu0 0.0
    %339 = vmatpush.msra.mxu0 0.0
    %340 = vmatpush.msra.mxu0 0.0
    %341 = vmatpush.msra.mxu0 0.0
    %342 = vmatpush.msra.mxu0 0.0
    %343 = vmatpush.msra.mxu0 0.0
    %344 = vmatpush.msra.mxu0 %v316
    %345 = vmatmul.f32.gmra.mxu0 %v327
    %v346 = vpop.f32.mrf.mxu0
    %v347 = vadd.f32 %v323, %v346
    %348 = vdwg.mxu0
    %vm349 = vcmask 124928
    %350 = vst.msk [vmem:[%s3] sm:$0x7] %vm349, %v347
    %352 = vrot.lane.b32.xlu0 %v347, 112
    %v353 = vpop.permute.xlu0 %352
    %s355 = scalar_lea.vmem %s3, 4
    %356 = vst.msk [vmem:[%s355] sm:$0x7] %vm349, %v353
    // Predicated region
    $region26: #{tpu_custom_call.1} parent=1 // pred_check
      _
    $region27: #{tpu_custom_call.1} parent=1 // pred_check_branch
      %358 = sbr.rel (0) target = $region29
    $region28: #{tpu_custom_call.1} parent=1 // pred_region
      _
    $region29: #{tpu_custom_call.1} parent=1 // pred_fallthru
      _
    // Predicated region
    $region30: #{tpu_custom_call.1} parent=1 // pred_check
      _
    $region31: #{tpu_custom_call.1} parent=1 // pred_check_branch
      %360 = sbr.rel (0) target = $region33
    $region32: #{tpu_custom_call.1} parent=1 // pred_region
      _
    $region33: #{tpu_custom_call.1} parent=1 // pred_fallthru
      _
    %361 = vsyncpa [#allocation3], 1
    %362 = vsyncpa [#allocation5], 1

</llo_original>
